<compile_context>
chip_gen: v7x
topology: tpu7x:2x2x1
jax: 0.10.0
libtpu: 0.0.40
codegen_flags: <defaults>
</compile_context>

<pallas_src>
import jax
import jax.numpy as jnp
from jax.experimental import pallas as pl
from jax.experimental.pallas import tpu as pltpu

IN_FEATURES = 128
OUT_FEATURES = 10


def _classifier_kernel(x_ref, w_ref, b_ref, o_ref):
    # x_ref: (tm, 128)   w_ref: (128, 10)   b_ref: (1, 10)   o_ref: (tm, 10)
    logits = jnp.dot(x_ref[...], w_ref[...], preferred_element_type=jnp.float32)
    logits = logits + b_ref[...]  # broadcast (1, 10) over rows

    # Numerically-stable softmax over the last dim (PyTorch Softmax(2)).
    m = jnp.max(logits, axis=-1, keepdims=True)
    e = jnp.exp(logits - m)
    denom = jnp.sum(e, axis=-1, keepdims=True)

    # EUP approximate reciprocal + one Newton-Raphson step -> full f32
    # precision at negligible VPU cost.
    inv = pl.reciprocal(denom, approx=True)
    inv = inv * (2.0 - denom * inv)

    o_ref[...] = (e * inv).astype(o_ref.dtype)


def classifier_forward(data, weight, bias, *, tm=2048):
    """data: (B, S, 128) f32; weight: (128, 10); bias: (10,). Returns (B, S, 10)."""
    B, S, F = data.shape
    assert F == IN_FEATURES
    M = B * S
    x2d = data.reshape(M, F)

    # Effective row tile: multiple of 8 (sublane), no larger than needed for
    # small inputs, large (default 2048) for big M so each DMA is ~1 MiB.
    tm_eff = max(8, min(tm, ((M + 7) // 8) * 8))
    grid = (pl.cdiv(M, tm_eff),)  # ragged last block is masked by Pallas

    b2d = bias.reshape(1, OUT_FEATURES)

    out2d = pl.pallas_call(
        _classifier_kernel,
        out_shape=jax.ShapeDtypeStruct((M, OUT_FEATURES), jnp.float32),
        grid_spec=pltpu.PrefetchScalarGridSpec(
            num_scalar_prefetch=0,
            grid=grid,
            in_specs=[
                pl.BlockSpec((tm_eff, IN_FEATURES), lambda i: (i, 0)),
                pl.BlockSpec((IN_FEATURES, OUT_FEATURES), lambda i: (0, 0)),
                pl.BlockSpec((1, OUT_FEATURES), lambda i: (0, 0)),
            ],
            out_specs=pl.BlockSpec((tm_eff, OUT_FEATURES), lambda i: (i, 0)),
        ),
        compiler_params=pltpu.CompilerParams(
            dimension_semantics=("parallel",),
        ),
    )(x2d, weight, b2d)

    return out2d.reshape(B, S, OUT_FEATURES)


def _init_params(key):
    # Deterministic init mimicking nn.Linear's uniform(-1/sqrt(fan_in), 1/sqrt(fan_in)).
    kw, kb = jax.random.split(key)
    bound = 1.0 / jnp.sqrt(float(IN_FEATURES))
    # Stored as (in, out) so the kernel does x @ w directly (PyTorch stores (out, in)).
    weight = jax.random.uniform(
        kw, (IN_FEATURES, OUT_FEATURES), jnp.float32, -bound, bound
    )
    bias = jax.random.uniform(kb, (OUT_FEATURES,), jnp.float32, -bound, bound)
    return weight, bias


if __name__ == "__main__":
    key = jax.random.PRNGKey(0)
    kx, kp = jax.random.split(key)

    B, S = 2, 8
    data = jax.random.normal(kx, (B, S, IN_FEATURES), jnp.float32)
    weight, bias = _init_params(kp)

    out = classifier_forward(data, weight, bias)
    out = jax.block_until_ready(out)

    # Pure-JAX reference check.
    ref_logits = jnp.einsum("bsf,fo->bso", data, weight) + bias
    ref = jax.nn.softmax(ref_logits, axis=2)
    assert out.shape == (B, S, OUT_FEATURES)
    assert jnp.allclose(out, ref, atol=1e-5, rtol=1e-5)
    # rows sum to 1
    assert jnp.allclose(jnp.sum(out, axis=-1), 1.0, atol=1e-5)

    print("KERNEL_OK")
</pallas_src>

<mosaic_0001>
module attributes {stable_mosaic.version = 11 : i64} {
  func.func @_classifier_kernel(%arg0: i32, %arg1: memref<16x128xf32, #tpu.memory_space<vmem>>, %arg2: memref<128x10xf32, #tpu.memory_space<vmem>>, %arg3: memref<1x10xf32, #tpu.memory_space<vmem>>, %arg4: memref<16x10xf32, #tpu.memory_space<vmem>>) attributes {dimension_semantics = [#tpu.dimension_semantics<parallel>], iteration_bounds = array<i64: 1>, scalar_prefetch = 0 : i64, scratch_operands = 0 : i64, tpu.core_type = #tpu.core_type<tc>, window_params = [{transform_indices = @transform_0, window_bounds = array<i64: 16, 128>}, {pipeline_mode = #tpu.pipeline_mode<synchronous>, transform_indices = @transform_1, window_bounds = array<i64: 128, 10>}, {pipeline_mode = #tpu.pipeline_mode<synchronous>, transform_indices = @transform_2, window_bounds = array<i64: 1, 10>}, {transform_indices = @transform_3, window_bounds = array<i64: 16, 10>}]} {
    %c0 = arith.constant 0 : index
    %c0_0 = arith.constant 0 : index
    %0 = vector.load %arg1[%c0, %c0_0] : memref<16x128xf32, #tpu.memory_space<vmem>>, vector<16x128xf32>
    %c0_1 = arith.constant 0 : index
    %c0_2 = arith.constant 0 : index
    %1 = vector.load %arg2[%c0_1, %c0_2] : memref<128x10xf32, #tpu.memory_space<vmem>>, vector<128x10xf32>
    %cst = arith.constant dense<0.000000e+00> : vector<16x10xf32>
    %2 = tpu.matmul %0, %1, %cst {dimension_numbers = #tpu.dot_dimension_numbers<[1], [0], [0], [1], [0, 0, 1, 1], [], []>} : vector<16x128xf32>, vector<128x10xf32>, vector<16x10xf32> -> vector<16x10xf32>
    %c0_3 = arith.constant 0 : index
    %c0_4 = arith.constant 0 : index
    %3 = vector.load %arg3[%c0_3, %c0_4] : memref<1x10xf32, #tpu.memory_space<vmem>>, vector<1x10xf32>
    %4 = vector.broadcast %3 : vector<1x10xf32> to vector<16x10xf32>
    %5 = arith.addf %2, %4 : vector<16x10xf32>
    %cst_5 = arith.constant dense<0xFF800000> : vector<16xf32>
    %6 = vector.multi_reduction <maximumf>, %5, %cst_5 [1] : vector<16x10xf32> to vector<16xf32>
    %7 = vector.shape_cast %6 : vector<16xf32> to vector<16x1xf32>
    %8 = vector.broadcast %7 : vector<16x1xf32> to vector<16x10xf32>
    %9 = arith.subf %5, %8 : vector<16x10xf32>
    %10 = math.exp %9 : vector<16x10xf32>
    %cst_6 = arith.constant dense<0.000000e+00> : vector<16xf32>
    %11 = vector.multi_reduction <add>, %10, %cst_6 [1] : vector<16x10xf32> to vector<16xf32>
    %12 = vector.shape_cast %11 : vector<16xf32> to vector<16x1xf32>
    %13 = tpu.reciprocal %12 {approx = true} : vector<16x1xf32> -> vector<16x1xf32>
    %14 = arith.mulf %12, %13 : vector<16x1xf32>
    %cst_7 = arith.constant 2.000000e+00 : f32
    %15 = vector.broadcast %cst_7 : f32 to vector<16x1xf32>
    %16 = arith.subf %15, %14 : vector<16x1xf32>
    %17 = arith.mulf %13, %16 : vector<16x1xf32>
    %18 = vector.broadcast %17 : vector<16x1xf32> to vector<16x10xf32>
    %19 = arith.mulf %10, %18 : vector<16x10xf32>
    %c0_8 = arith.constant 0 : index
    %c0_9 = arith.constant 0 : index
    %20 = vector.load %arg4[%c0_8, %c0_9] : memref<16x10xf32, #tpu.memory_space<vmem>>, vector<16x10xf32>
    tpu.vector_store %arg4[%c0_8, %c0_9], %19 {strides = array<i32>} : memref<16x10xf32, #tpu.memory_space<vmem>>, vector<16x10xf32>,
    return
  }
  func.func @transform_0(%arg0: i32) -> (i32, i32) {
    %c0_i32 = arith.constant 0 : i32
    %c0_i32_0 = arith.constant 0 : i32
    return %arg0, %c0_i32 : i32, i32
  }
  func.func @transform_1(%arg0: i32) -> (i32, i32) {
    %c0_i32 = arith.constant 0 : i32
    %c0_i32_0 = arith.constant 0 : i32
    %c0_i32_1 = arith.constant 0 : i32
    return %c0_i32, %c0_i32_0 : i32, i32
  }
  func.func @transform_2(%arg0: i32) -> (i32, i32) {
    %c0_i32 = arith.constant 0 : i32
    %c0_i32_0 = arith.constant 0 : i32
    %c0_i32_1 = arith.constant 0 : i32
    return %c0_i32, %c0_i32_0 : i32, i32
  }
  func.func @transform_3(%arg0: i32) -> (i32, i32) {
    %c0_i32 = arith.constant 0 : i32
    %c0_i32_0 = arith.constant 0 : i32
    return %arg0, %c0_i32 : i32, i32
  }
}

</mosaic_0001>

<llo_original>
// kernel: tpu_custom_call.1
$region0: #{tpu_custom_call.1}
  #allocation0 [shape = 'u32[]', space=smem, size = 0x4, offset = 0x4, fixed_abs, tag = 'smem constant byte address 0x4 - core index']
  #allocation1 [shape = 'u32[144,128]{1,0:T(1,128)}', space=vmem, size = 0x12000, scoped, tag = 'internal scratch']
  %s0 = inlined_call_operand.vmem [shape: f32[16,128], index: 0, kind: input, shape index: {}]
  %s1 = inlined_call_operand.vmem [shape: f32[128,10], index: 1, kind: input, shape index: {}]
  %s2 = inlined_call_operand.vmem [shape: f32[1,10], index: 2, kind: input, shape index: {}]
  %s3 = inlined_call_operand.hbm [shape: f32[16,10], index: 3, kind: output, shape index: {}]
  %s4 = sld [smem:[#allocation0]]
  $region22: #{tpu_custom_call.1} parent=0
    _
  %s6 = ssub.s32 1, %s4
  %s7 = scalar_select 0, %s6, %s4
  $region1: #{tpu_custom_call.1} parent=0
    #allocation2 [shape = 'u8[8192]{0}', space=vmem, size = 0x2000, scoped, tag = 'output window, operand 0, single buffered']
    #allocation3 [shape = 's32[1]{0}', space=sflag, size = 0x4, scoped, tag = 'scoped memory for tpu_custom_call.1']
    %8 = vsyncpa [#allocation3], 0
    // Predicated region
    $region2: #{tpu_custom_call.1} parent=1 // pred_check
      _
    $region3: #{tpu_custom_call.1} parent=1 // pred_check_branch
      %10 = sbr.rel (0) target = $region5
    $region4: #{tpu_custom_call.1} parent=1 // pred_region
      _
    $region5: #{tpu_custom_call.1} parent=1 // pred_fallthru
      _
    // Predicated region
    $region6: #{tpu_custom_call.1} parent=1 // pred_check
      _
    $region7: #{tpu_custom_call.1} parent=1 // pred_check_branch
      %12 = sbr.rel (0) target = $region9
    $region8: #{tpu_custom_call.1} parent=1 // pred_region
      _
    $region9: #{tpu_custom_call.1} parent=1 // pred_fallthru
      _
    // Predicated region
    $region10: #{tpu_custom_call.1} parent=1 // pred_check
      _
    $region11: #{tpu_custom_call.1} parent=1 // pred_check_branch
      %14 = sbr.rel (0) target = $region13
    $region12: #{tpu_custom_call.1} parent=1 // pred_region
      _
    $region13: #{tpu_custom_call.1} parent=1 // pred_fallthru
      _
    %v15 = vld [vmem:[%s0] sm:$0xff]
    %v16 = vld [vmem:[%s0 + $0x8] sm:$0xff]
    %v17 = vld [vmem:[%s1] sm:$0xff]
    %v18 = vld [vmem:[%s1 + $0x8] sm:$0xff]
    %v19 = vld [vmem:[%s1 + $0x10] sm:$0xff]
    %v20 = vld [vmem:[%s1 + $0x18] sm:$0xff]
    %v21 = vld [vmem:[%s1 + $0x20] sm:$0xff]
    %v22 = vld [vmem:[%s1 + $0x28] sm:$0xff]
    %v23 = vld [vmem:[%s1 + $0x30] sm:$0xff]
    %v24 = vld [vmem:[%s1 + $0x38] sm:$0xff]
    %v25 = vld [vmem:[%s1 + $0x40] sm:$0xff]
    %v26 = vld [vmem:[%s1 + $0x48] sm:$0xff]
    %v27 = vld [vmem:[%s1 + $0x50] sm:$0xff]
    %v28 = vld [vmem:[%s1 + $0x58] sm:$0xff]
    %v29 = vld [vmem:[%s1 + $0x60] sm:$0xff]
    %v30 = vld [vmem:[%s1 + $0x68] sm:$0xff]
    %v31 = vld [vmem:[%s1 + $0x70] sm:$0xff]
    %v32 = vld [vmem:[%s1 + $0x78] sm:$0xff]
    %v33 = vld [vmem:[%s2] sm:$0x1]
    %v35 = vlaneseq
    %v36 = vshrl.u32 %v35, 7
    %v37 = vsub.s32 0, %v36
    %v38 = vrot.slane %v33, %v37
    %40 = vmatprep.subr.mxu0 0.0
    %41 = vmatpush1.msra.mxu0 %v17
    %42 = vmatprep.subr.mxu0 0.0
    %43 = vmatpush1.msra.mxu0 %v18
    %44 = vmatprep.subr.mxu0 0.0
    %45 = vmatpush1.msra.mxu0 %v19
    %46 = vmatprep.subr.mxu0 0.0
    %47 = vmatpush1.msra.mxu0 %v20
    %48 = vmatprep.subr.mxu0 0.0
    %49 = vmatpush1.msra.mxu0 %v21
    %50 = vmatprep.subr.mxu0 0.0
    %51 = vmatpush1.msra.mxu0 %v22
    %52 = vmatprep.subr.mxu0 0.0
    %53 = vmatpush1.msra.mxu0 %v23
    %54 = vmatprep.subr.mxu0 0.0
    %55 = vmatpush1.msra.mxu0 %v24
    %56 = vmatprep.subr.mxu0 0.0
    %57 = vmatpush1.msra.mxu0 %v25
    %58 = vmatprep.subr.mxu0 0.0
    %59 = vmatpush1.msra.mxu0 %v26
    %60 = vmatprep.subr.mxu0 0.0
    %61 = vmatpush1.msra.mxu0 %v27
    %62 = vmatprep.subr.mxu0 0.0
    %63 = vmatpush1.msra.mxu0 %v28
    %64 = vmatprep.subr.mxu0 0.0
    %65 = vmatpush1.msra.mxu0 %v29
    %66 = vmatprep.subr.mxu0 0.0
    %67 = vmatpush1.msra.mxu0 %v30
    %68 = vmatprep.subr.mxu0 0.0
    %69 = vmatpush1.msra.mxu0 %v31
    %70 = vmatprep.subr.mxu0 0.0
    %71 = vmatpush1.msra.mxu0 %v32
    %72 = vmatprep.subr.mxu0 0.0
    %73 = vmatpush1.msra.mxu0 0.0
    %74 = vmatprep.subr.mxu0 0.0
    %75 = vmatpush1.msra.mxu0 0.0
    %76 = vmatprep.subr.mxu0 0.0
    %77 = vmatpush1.msra.mxu0 0.0
    %78 = vmatprep.subr.mxu0 0.0
    %79 = vmatpush1.msra.mxu0 0.0
    %80 = vmatprep.subr.mxu0 0.0
    %81 = vmatpush1.msra.mxu0 0.0
    %82 = vmatprep.subr.mxu0 0.0
    %83 = vmatpush1.msra.mxu0 0.0
    %84 = vmatprep.subr.mxu0 0.0
    %85 = vmatpush1.msra.mxu0 0.0
    %86 = vmatprep.subr.mxu0 0.0
    %87 = vmatpush1.msra.mxu0 0.0
    %88 = vmatprep.subr.mxu0 0.0
    %89 = vmatpush1.msra.mxu0 0.0
    %90 = vmatprep.subr.mxu0 0.0
    %91 = vmatpush1.msra.mxu0 0.0
    %92 = vmatprep.subr.mxu0 0.0
    %93 = vmatpush1.msra.mxu0 0.0
    %94 = vmatprep.subr.mxu0 0.0
    %95 = vmatpush1.msra.mxu0 0.0
    %96 = vmatprep.subr.mxu0 0.0
    %97 = vmatpush1.msra.mxu0 0.0
    %98 = vmatprep.subr.mxu0 0.0
    %99 = vmatpush1.msra.mxu0 0.0
    %100 = vmatprep.subr.mxu0 0.0
    %101 = vmatpush1.msra.mxu0 0.0
    %102 = vmatprep.subr.mxu0 0.0
    %103 = vmatpush1.msra.mxu0 0.0
    %104 = vmatprep.mubr.f32.mxu0 0.0
    %105 = vmatmul.mubr.f32.gmra.mrb[0].mxu0 %v15
    %v106 = vpop.f32.mrb[0].mxu0
    %v107 = vadd.f32 %v38, %v106
    %v108 = vpop.f32.mrb[0].mxu0
    %109 = vmatprep.mubr.f32.mxu0 0.0
    %110 = vmatmul.mubr.f32.gmra.mrb[0].mxu0 %v16
    %v111 = vpop.f32.mrb[0].mxu0
    %v112 = vadd.f32 %v38, %v111
    %v113 = vpop.f32.mrb[0].mxu0
    %114 = vdwg.mxu0
    %vm115 = vcmask 80896
    %v116 = vsel %vm115, %v107, -inf
    %117 = vmax.xlane.f32.xlu0 %v116
    %v118 = vpop.xlane.xlu0 %117
    %v119 = vsel %vm115, %v112, -inf
    %120 = vmax.xlane.f32.xlu0 %v119
    %v121 = vpop.xlane.xlu0 %120
    %v122 = vsub.f32 %v107, %v118
    %v123 = vsub.f32 %v112, %v121
    %v124 = vmul.f32 %v122, 1.442695
    %v125 = vpow.pop %v124
    %v126 = vmul.f32 %v123, 1.442695
    %v127 = vpow.pop %v126
    %v128 = vsel %vm115, %v125, 0.0
    %129 = vadd.xlane.f32.xlu0 %v128
    %v130 = vpop.xlane.xlu0 %129
    %v131 = vsel %vm115, %v127, 0.0
    %132 = vadd.xlane.f32.xlu0 %v131
    %v133 = vpop.xlane.xlu0 %132
    %v134 = vrcp.pop %v130
    %v135 = vrcp.pop %v133
    %v136 = vmul.f32 %v130, %v134
    %v137 = vmul.f32 %v133, %v135
    %v138 = vsub.f32 2.0, %v136
    %v139 = vsub.f32 2.0, %v137
    %v140 = vmul.f32 %v134, %v138
    %v141 = vmul.f32 %v135, %v139
    %v142 = vmul.f32 %v125, %v140
    %v143 = vmul.f32 %v127, %v141
    %144 = vst.msk [vmem:[#allocation2] sm:$0xff] %vm115, %v142
    %145 = vst.msk [vmem:[#allocation2 + $0x8] sm:$0xff] %vm115, %v143
    // Predicated region
    $region14: #{tpu_custom_call.1} parent=1 // pred_check
      _
    $region15: #{tpu_custom_call.1} parent=1 // pred_check_branch
      %147 = sbr.rel (0) target = $region17
    $region16: #{tpu_custom_call.1} parent=1 // pred_region
      %s149 = ssub.s32 256, 256
      %150 = vsyncadd [#allocation3], %s149
      %s151 = sshll.u32 [#allocation2], 4
      %s152 = int_to_ptr.vmem [resolvable:$true] %s151
      %157 = dma.vmem_to_hbm [thread:$0]  %s152, 256, %s3, [#allocation3], 128, 128, 8
    $region17: #{tpu_custom_call.1} parent=1 // pred_fallthru
      _
    // Predicated region
    $region18: #{tpu_custom_call.1} parent=1 // pred_check
      _
    $region19: #{tpu_custom_call.1} parent=1 // pred_check_branch
      %159 = sbr.rel (0) target = $region21
    $region20: #{tpu_custom_call.1} parent=1 // pred_region
      %160 = dma.done [#allocation3], 256
    $region21: #{tpu_custom_call.1} parent=1 // pred_fallthru
      _
    %161 = vsyncpa [#allocation3], 1

</llo_original>
